<compile_context>
chip_gen: v5e
topology: v5e:2x2
jax: 0.10.0
libtpu: 0.0.40
codegen_flags: <defaults>
</compile_context>

<pallas_src>
import functools

import jax
import jax.numpy as jnp
from jax.experimental import pallas as pl
from jax.experimental.pallas import tpu as pltpu

_ROW_ALIGN = 16           # slab row alignment (bf16 packed-sublane tile height)
_MIN_LANES = 128          # lane-dense width for intermediates and the output
_GRIDLESS_MAX_B = 4096    # up to this batch the whole problem sits in VMEM, no grid
_DEFAULT_BATCH_BLOCK = 2048


def _round_up(n, m):
    return ((n + m - 1) // m) * m


def _critic_kernel(obs_ref, act_ref, w_ref, b_ref, q_ref, *,
                   Fp, Ap, L, r1, r2, r3, cdtype):
    """Fused two-head critic: 3 lane-dense MXU matmuls on one packed weight slab."""
    obs = obs_ref[...]                               # (B, Fp)  cdtype
    act = act_ref[...]                               # (B, Ap)  cdtype

    # Layer 1: x @ W1 with x = [obs | act] folded into two partial dots, so no
    # concat is ever materialized. Lanes [0,H) = head 1, [H,2H) = head 2,
    # lanes [2H,L) are zero padding (bias zero there too -> relu keeps them 0).
    h1 = (jnp.dot(obs, w_ref[0:Fp, :], preferred_element_type=jnp.float32)
          + jnp.dot(act, w_ref[r1:r1 + Ap, :], preferred_element_type=jnp.float32)
          + b_ref[0:1, :])
    h1 = jnp.maximum(h1, 0.0).astype(cdtype)         # (B, L)

    # Layer 2: block-diagonal (L, L) weight keeps the two heads independent.
    h2 = jnp.maximum(
        jnp.dot(h1, w_ref[r2:r2 + L, :], preferred_element_type=jnp.float32)
        + b_ref[1:2, :],
        0.0).astype(cdtype)                          # (B, L)

    # Layer 3: (L, L) weight whose only non-zero lanes are 0 (q1) and 1 (q2).
    # Store the full lane-dense (B, L) slab — no masked partial store.
    q_ref[...] = (jnp.dot(h2, w_ref[r3:r3 + L, :], preferred_element_type=jnp.float32)
                  + b_ref[2:3, :])


def pack_params(params, feature_dim, action_dim, hidden_dim, dtype=jnp.bfloat16):
    """Pack both Q-heads' weights into one lane-dense weight slab + one bias slab.

    Done once at init time; the zeroed off-diagonal W2 blocks, zero lane padding
    and zero row padding preserve exact head independence / numerics.
    """
    F, A, H = feature_dim, action_dim, hidden_dim
    H2 = 2 * H
    L = max(_round_up(H2, _MIN_LANES), _MIN_LANES)    # lane-dense width
    Fp = _round_up(F, _ROW_ALIGN)
    Ap = _round_up(A, _ROW_ALIGN)
    r1 = Fp                       # start row of W1-action block
    r2 = r1 + Ap                  # start row of block-diagonal W2
    r3 = r2 + L                   # start row of lane-padded W3
    rows = r3 + L

    p1, p2 = params["q1"], params["q2"]

    w = jnp.zeros((rows, L), jnp.float32)
    w = w.at[0:F, 0:H].set(p1["w1"][:F])              # W1 obs part, head 1
    w = w.at[0:F, H:H2].set(p2["w1"][:F])             # W1 obs part, head 2
    w = w.at[r1:r1 + A, 0:H].set(p1["w1"][F:])        # W1 action part, head 1
    w = w.at[r1:r1 + A, H:H2].set(p2["w1"][F:])       # W1 action part, head 2
    w = w.at[r2:r2 + H, 0:H].set(p1["w2"])            # W2 block-diagonal
    w = w.at[r2 + H:r2 + H2, H:H2].set(p2["w2"])
    w = w.at[r3:r3 + H, 0:1].set(p1["w3"])            # W3 -> lane 0 (q1)
    w = w.at[r3 + H:r3 + H2, 1:2].set(p2["w3"])       # W3 -> lane 1 (q2)

    b = jnp.zeros((8, L), jnp.float32)                # biases stay f32 (accum dtype)
    b = b.at[0, 0:H].set(p1["b1"][0]); b = b.at[0, H:H2].set(p2["b1"][0])
    b = b.at[1, 0:H].set(p1["b2"][0]); b = b.at[1, H:H2].set(p2["b2"][0])
    b = b.at[2, 0].set(p1["b3"][0, 0]); b = b.at[2, 1].set(p2["b3"][0, 0])

    return {"w": w.astype(dtype), "b": b,
            "F": F, "A": A, "H": H,
            "Fp": Fp, "Ap": Ap, "L": L, "r1": r1, "r2": r2, "r3": r3}


def critic_forward(obs, action, packed, *, batch_block=None):
    """obs: (B, F), action: (B, A). Returns (q1, q2), each (B, 1) float32."""
    assert obs.shape[0] == action.shape[0]
    w, b = packed["w"], packed["b"]
    F, A = packed["F"], packed["A"]
    Fp, Ap, L = packed["Fp"], packed["Ap"], packed["L"]
    r1, r2, r3 = packed["r1"], packed["r2"], packed["r3"]
    cdtype = w.dtype
    B = obs.shape[0]
    assert obs.shape[1] == F and action.shape[1] == A

    # Cast to the MXU compute dtype and zero-pad contraction dims to the slab's
    # 16-aligned row layout (the corresponding slab rows are exactly zero).
    obs = obs.astype(cdtype)
    act = action.astype(cdtype)
    if Fp > F:
        obs = jnp.pad(obs, ((0, 0), (0, Fp - F)))
    if Ap > A:
        act = jnp.pad(act, ((0, 0), (0, Ap - A)))

    kernel = functools.partial(_critic_kernel, Fp=Fp, Ap=Ap, L=L,
                               r1=r1, r2=r2, r3=r3, cdtype=cdtype)

    itemsize = jnp.dtype(cdtype).itemsize
    cost = pl.CostEstimate(
        flops=2 * B * (Fp + Ap + 2 * L) * L,
        transcendentals=0,
        bytes_accessed=int(B * (Fp + Ap) * itemsize + w.size * itemsize
                           + b.size * 4 + B * L * 4))

    # Grid decision: whole problem in VMEM for small/medium B; otherwise shard the
    # batch over a 1-D "parallel" grid with LARGE blocks (>= 2 steps => both v7x TCs).
    if batch_block is None and B > _GRIDLESS_MAX_B:
        batch_block = _DEFAULT_BATCH_BLOCK
    if batch_block is not None:
        batch_block = max(8, _round_up(batch_block, 8))

    if batch_block is not None and B > batch_block:
        Bp = _round_up(B, batch_block)       # cdiv-style grid via zero-padded batch
        if Bp > B:
            obs = jnp.pad(obs, ((0, Bp - B), (0, 0)))
            act = jnp.pad(act, ((0, Bp - B), (0, 0)))
        q = pl.pallas_call(
            kernel,
            out_shape=jax.ShapeDtypeStruct((Bp, L), jnp.float32),
            grid=(Bp // batch_block,),
            in_specs=[
                pl.BlockSpec((batch_block, Fp), lambda i: (i, 0)),
                pl.BlockSpec((batch_block, Ap), lambda i: (i, 0)),
                pl.BlockSpec(w.shape, lambda i: (0, 0)),
                pl.BlockSpec(b.shape, lambda i: (0, 0)),
            ],
            out_specs=pl.BlockSpec((batch_block, L), lambda i: (i, 0)),
            compiler_params=pltpu.CompilerParams(
                dimension_semantics=("parallel",)),
            cost_estimate=cost,
        )(obs, act, w, b)
        q = q[:B]
    else:
        # Small/medium problem: no grid — every operand is one full block in VMEM.
        q = pl.pallas_call(
            kernel,
            out_shape=jax.ShapeDtypeStruct((B, L), jnp.float32),
            in_specs=[pl.BlockSpec(memory_space=pltpu.MemorySpace.VMEM)] * 4,
            out_specs=pl.BlockSpec(memory_space=pltpu.MemorySpace.VMEM),
            cost_estimate=cost,
        )(obs, act, w, b)

    return q[:, 0:1], q[:, 1:2]


def init_params(key, feature_dim, action_dim, hidden_dim):
    """Deterministic synthetic init (shapes match the PyTorch QFunction trunks)."""
    in_dim = feature_dim + action_dim

    def linear(k, fan_in, fan_out):
        kw, kb = jax.random.split(k)
        scale = 1.0 / jnp.sqrt(float(fan_in))
        w = jax.random.uniform(kw, (fan_in, fan_out), jnp.float32, -scale, scale)
        b = jax.random.uniform(kb, (1, fan_out), jnp.float32, -scale, scale)
        return w, b

    keys = jax.random.split(key, 6)
    params = {}
    for head, ks in zip(("q1", "q2"), (keys[:3], keys[3:])):
        w1, b1 = linear(ks[0], in_dim, hidden_dim)
        w2, b2 = linear(ks[1], hidden_dim, hidden_dim)
        w3, b3 = linear(ks[2], hidden_dim, 1)
        params[head] = dict(w1=w1, b1=b1, w2=w2, b2=b2, w3=w3, b3=b3)
    return params


def critic_reference(obs, action, params):
    """Pure-JAX reference (mirrors the PyTorch forward) for correctness checking."""
    x = jnp.concatenate([obs, action], axis=1).astype(jnp.float32)

    def head(p):
        h1 = jnp.maximum(x @ p["w1"] + p["b1"], 0.0)
        h2 = jnp.maximum(h1 @ p["w2"] + p["b2"], 0.0)
        return h2 @ p["w3"] + p["b3"]

    return head(params["q1"]), head(params["q2"])


if __name__ == "__main__":
    feature_dim = 32           # encoder_feature_dim (obs already encoded)
    action_dim = 4             # action_shape[0]
    hidden_dim = 32            # hidden_dim

    key = jax.random.PRNGKey(0)
    k_obs, k_act, k_params, k_obs2, k_act2, k_obs3, k_act3 = jax.random.split(key, 7)
    params = init_params(k_params, feature_dim, action_dim, hidden_dim)

    # Packed once at init time; f32 packing for exact checks, bf16 for MXU speed.
    packed_f32 = pack_params(params, feature_dim, action_dim, hidden_dim,
                             dtype=jnp.float32)
    packed_bf16 = pack_params(params, feature_dim, action_dim, hidden_dim,
                              dtype=jnp.bfloat16)

    # --- small batch, grid-less path, f32 compute (exactness check) ---
    B = 2
    obs = jax.random.normal(k_obs, (B, feature_dim), jnp.float32)
    action = jax.random.normal(k_act, (B, action_dim), jnp.float32)
    q1, q2 = critic_forward(obs, action, packed_f32)
    q1 = jax.block_until_ready(q1)
    q2 = jax.block_until_ready(q2)
    r1_, r2_ = critic_reference(obs, action, params)
    assert q1.shape == (B, 1) and q2.shape == (B, 1)
    assert jnp.allclose(q1, r1_, atol=1e-4, rtol=1e-4)
    assert jnp.allclose(q2, r2_, atol=1e-4, rtol=1e-4)

    # --- large batch, gridded path, bf16 MXU inputs (2 steps -> v7x megacore) ---
    B2 = 2048
    obs2 = jax.random.normal(k_obs2, (B2, feature_dim), jnp.float32)
    action2 = jax.random.normal(k_act2, (B2, action_dim), jnp.float32)
    g1, g2 = critic_forward(obs2, action2, packed_bf16, batch_block=1024)
    g1 = jax.block_until_ready(g1)
    g2 = jax.block_until_ready(g2)
    s1, s2 = critic_reference(obs2, action2, params)
    assert g1.shape == (B2, 1) and g2.shape == (B2, 1)
    assert jnp.allclose(g1, s1, atol=5e-2, rtol=5e-2)
    assert jnp.allclose(g2, s2, atol=5e-2, rtol=5e-2)

    # --- ragged batch (B not a multiple of the block): padded cdiv grid, f32 ---
    B3 = 2500
    obs3 = jax.random.normal(k_obs3, (B3, feature_dim), jnp.float32)
    action3 = jax.random.normal(k_act3, (B3, action_dim), jnp.float32)
    u1, u2 = critic_forward(obs3, action3, packed_f32, batch_block=1024)
    u1 = jax.block_until_ready(u1)
    u2 = jax.block_until_ready(u2)
    t1, t2 = critic_reference(obs3, action3, params)
    assert u1.shape == (B3, 1) and u2.shape == (B3, 1)
    assert jnp.allclose(u1, t1, atol=1e-4, rtol=1e-4)
    assert jnp.allclose(u2, t2, atol=1e-4, rtol=1e-4)

    print("KERNEL_OK")
</pallas_src>

<mosaic_0001>
module attributes {stable_mosaic.version = 11 : i64} {
  func.func @_critic_kernel(%arg0: memref<2x32xf32, #tpu.memory_space<vmem>>, %arg1: memref<2x16xf32, #tpu.memory_space<vmem>>, %arg2: memref<304x128xf32, #tpu.memory_space<vmem>>, %arg3: memref<8x128xf32, #tpu.memory_space<vmem>>, %arg4: memref<2x128xf32, #tpu.memory_space<vmem>>) attributes {dimension_semantics = [], scalar_prefetch = 0 : i64, scratch_operands = 0 : i64, tpu.core_type = #tpu.core_type<tc>} {
    %c0 = arith.constant 0 : index
    %c0_0 = arith.constant 0 : index
    %0 = vector.load %arg0[%c0, %c0_0] : memref<2x32xf32, #tpu.memory_space<vmem>>, vector<2x32xf32>
    %c0_1 = arith.constant 0 : index
    %c0_2 = arith.constant 0 : index
    %1 = vector.load %arg1[%c0_1, %c0_2] : memref<2x16xf32, #tpu.memory_space<vmem>>, vector<2x16xf32>
    %c0_3 = arith.constant 0 : index
    %c0_4 = arith.constant 0 : index
    %2 = vector.load %arg2[%c0_3, %c0_4] : memref<304x128xf32, #tpu.memory_space<vmem>>, vector<32x128xf32>
    %cst = arith.constant dense<0.000000e+00> : vector<2x128xf32>
    %3 = tpu.matmul %0, %2, %cst {dimension_numbers = #tpu.dot_dimension_numbers<[1], [0], [0], [1], [0, 0, 1, 1], [], []>} : vector<2x32xf32>, vector<32x128xf32>, vector<2x128xf32> -> vector<2x128xf32>
    %c32 = arith.constant 32 : index
    %c0_5 = arith.constant 0 : index
    %4 = vector.load %arg2[%c32, %c0_5] : memref<304x128xf32, #tpu.memory_space<vmem>>, vector<16x128xf32>
    %cst_6 = arith.constant dense<0.000000e+00> : vector<2x128xf32>
    %5 = tpu.matmul %1, %4, %cst_6 {dimension_numbers = #tpu.dot_dimension_numbers<[1], [0], [0], [1], [0, 0, 1, 1], [], []>} : vector<2x16xf32>, vector<16x128xf32>, vector<2x128xf32> -> vector<2x128xf32>
    %6 = arith.addf %3, %5 : vector<2x128xf32>
    %c0_7 = arith.constant 0 : index
    %c0_8 = arith.constant 0 : index
    %7 = vector.load %arg3[%c0_7, %c0_8] : memref<8x128xf32, #tpu.memory_space<vmem>>, vector<1x128xf32>
    %8 = vector.broadcast %7 : vector<1x128xf32> to vector<2x128xf32>
    %9 = arith.addf %6, %8 : vector<2x128xf32>
    %cst_9 = arith.constant 0.000000e+00 : f32
    %10 = vector.broadcast %cst_9 : f32 to vector<2x128xf32>
    %11 = arith.maximumf %9, %10 : vector<2x128xf32>
    %c48 = arith.constant 48 : index
    %c0_10 = arith.constant 0 : index
    %12 = vector.load %arg2[%c48, %c0_10] : memref<304x128xf32, #tpu.memory_space<vmem>>, vector<128x128xf32>
    %cst_11 = arith.constant dense<0.000000e+00> : vector<2x128xf32>
    %13 = tpu.matmul %11, %12, %cst_11 {dimension_numbers = #tpu.dot_dimension_numbers<[1], [0], [0], [1], [0, 0, 1, 1], [], []>} : vector<2x128xf32>, vector<128x128xf32>, vector<2x128xf32> -> vector<2x128xf32>
    %c1 = arith.constant 1 : index
    %c0_12 = arith.constant 0 : index
    %14 = vector.load %arg3[%c1, %c0_12] : memref<8x128xf32, #tpu.memory_space<vmem>>, vector<1x128xf32>
    %15 = vector.broadcast %14 : vector<1x128xf32> to vector<2x128xf32>
    %16 = arith.addf %13, %15 : vector<2x128xf32>
    %cst_13 = arith.constant 0.000000e+00 : f32
    %17 = vector.broadcast %cst_13 : f32 to vector<2x128xf32>
    %18 = arith.maximumf %16, %17 : vector<2x128xf32>
    %c176 = arith.constant 176 : index
    %c0_14 = arith.constant 0 : index
    %19 = vector.load %arg2[%c176, %c0_14] : memref<304x128xf32, #tpu.memory_space<vmem>>, vector<128x128xf32>
    %cst_15 = arith.constant dense<0.000000e+00> : vector<2x128xf32>
    %20 = tpu.matmul %18, %19, %cst_15 {dimension_numbers = #tpu.dot_dimension_numbers<[1], [0], [0], [1], [0, 0, 1, 1], [], []>} : vector<2x128xf32>, vector<128x128xf32>, vector<2x128xf32> -> vector<2x128xf32>
    %c2 = arith.constant 2 : index
    %c0_16 = arith.constant 0 : index
    %21 = vector.load %arg3[%c2, %c0_16] : memref<8x128xf32, #tpu.memory_space<vmem>>, vector<1x128xf32>
    %22 = vector.broadcast %21 : vector<1x128xf32> to vector<2x128xf32>
    %23 = arith.addf %20, %22 : vector<2x128xf32>
    %c0_17 = arith.constant 0 : index
    %c0_18 = arith.constant 0 : index
    %24 = vector.load %arg4[%c0_17, %c0_18] : memref<2x128xf32, #tpu.memory_space<vmem>>, vector<2x128xf32>
    tpu.vector_store %arg4[%c0_17, %c0_18], %23 {strides = array<i32>} : memref<2x128xf32, #tpu.memory_space<vmem>>, vector<2x128xf32>,
    return
  }
}

</mosaic_0001>

<llo_original>
// kernel: tpu_custom_call.1
$region0: #{tpu_custom_call.1}
  #allocation0 [shape = 'u32[]', space=smem, size = 0x4, offset = 0x4, fixed_abs, tag = 'smem constant byte address 0x4 - core index']
  #allocation1 [shape = 'u32[72,128]{1,0:T(1,128)}', space=vmem, size = 0x9000, scoped, tag = 'internal scratch']
  %s0 = inlined_call_operand.hbm [shape: f32[2,32], index: 0, kind: input, shape index: {}]
  %s1 = inlined_call_operand.hbm [shape: f32[2,16], index: 1, kind: input, shape index: {}]
  %s2 = inlined_call_operand.hbm [shape: f32[304,128], index: 2, kind: input, shape index: {}]
  %s3 = inlined_call_operand.hbm [shape: f32[8,128], index: 3, kind: input, shape index: {}]
  %s4 = inlined_call_operand.hbm [shape: f32[2,128], index: 4, kind: output, shape index: {}]
  %s5 = sld [smem:[#allocation0]]
  $region42: #{tpu_custom_call.1} parent=0
    _
  %s7 = ssub.s32 1, %s5
  %s8 = scalar_select 0, %s7, %s5
  $region1: #{tpu_custom_call.1} parent=0
    #allocation2 [shape = 'u8[1024]{0}', space=vmem, size = 0x400, scoped, tag = 'input window, operand 0, single buffered']
    #allocation3 [shape = 's32[1]{0}', space=sflag, size = 0x4, scoped, tag = 'scoped memory for tpu_custom_call.1']
    #allocation4 [shape = 's32[1]{0}', space=sflag, size = 0x4, scoped, tag = 'scoped memory for tpu_custom_call.1']
    #allocation5 [shape = 'u8[1024]{0}', space=vmem, size = 0x400, scoped, tag = 'input window, operand 1, single buffered']
    #allocation6 [shape = 's32[1]{0}', space=sflag, size = 0x4, scoped, tag = 'scoped memory for tpu_custom_call.1']
    #allocation7 [shape = 'u8[155648]{0}', space=vmem, size = 0x26000, scoped, tag = 'input window, operand 2, single buffered']
    #allocation8 [shape = 'u8[4096]{0}', space=vmem, size = 0x1000, scoped, tag = 'input window, operand 3, single buffered']
    #allocation9 [shape = 's32[1]{0}', space=sflag, size = 0x4, scoped, tag = 'scoped memory for tpu_custom_call.1']
    #allocation10 [shape = 'u8[1024]{0}', space=vmem, size = 0x400, scoped, tag = 'output window, operand 0, single buffered']
    %9 = vsyncpa [#allocation3], 0
    %10 = vsyncpa [#allocation6], 0
    %11 = vsyncpa [#allocation9], 0
    %12 = vsyncpa [#allocation4], 0
    // Predicated region
    $region2: #{tpu_custom_call.1} parent=1 // pred_check
      _
    $region3: #{tpu_custom_call.1} parent=1 // pred_check_branch
      %14 = sbr.rel (0) target = $region5
    $region4: #{tpu_custom_call.1} parent=1 // pred_region
      %16 = vsyncadd [#allocation3], 0
      %s18 = sshll.u32 %s0, 4
      %s19 = int_to_ptr.hbm [resolvable:$true] %s18
      %s20 = sshll.u32 [#allocation2], 4
      %s21 = int_to_ptr.vmem [resolvable:$true] %s20
      %23 = dma.hbm_to_vmem [thread:$0]  %s19, 32, %s21, [#allocation3]
    $region5: #{tpu_custom_call.1} parent=1 // pred_fallthru
      _
    // Predicated region
    $region6: #{tpu_custom_call.1} parent=1 // pred_check
      _
    $region7: #{tpu_custom_call.1} parent=1 // pred_check_branch
      %25 = sbr.rel (0) target = $region9
    $region8: #{tpu_custom_call.1} parent=1 // pred_region
      %27 = vsyncadd [#allocation6], 0
      %s29 = sshll.u32 %s1, 4
      %s30 = int_to_ptr.hbm [resolvable:$true] %s29
      %s31 = sshll.u32 [#allocation5], 4
      %s32 = int_to_ptr.vmem [resolvable:$true] %s31
      %34 = dma.hbm_to_vmem [thread:$0]  %s30, 32, %s32, [#allocation6]
    $region9: #{tpu_custom_call.1} parent=1 // pred_fallthru
      _
    // Predicated region
    $region10: #{tpu_custom_call.1} parent=1 // pred_check
      _
    $region11: #{tpu_custom_call.1} parent=1 // pred_check_branch
      %36 = sbr.rel (0) target = $region13
    $region12: #{tpu_custom_call.1} parent=1 // pred_region
      %38 = vsyncadd [#allocation6], 0
      %s39 = sshll.u32 %s2, 4
      %s40 = int_to_ptr.hbm [resolvable:$true] %s39
      %s41 = sshll.u32 [#allocation7], 4
      %s42 = int_to_ptr.vmem [resolvable:$true] %s41
      %47 = dma.hbm_to_vmem [thread:$0]  %s40, 4864, %s42, [#allocation6], 128, 128, 8
    $region13: #{tpu_custom_call.1} parent=1 // pred_fallthru
      _
    // Predicated region
    $region14: #{tpu_custom_call.1} parent=1 // pred_check
      _
    $region15: #{tpu_custom_call.1} parent=1 // pred_check_branch
      %49 = sbr.rel (0) target = $region17
    $region16: #{tpu_custom_call.1} parent=1 // pred_region
      %51 = vsyncadd [#allocation9], 0
      %s53 = sshll.u32 %s3, 4
      %s54 = int_to_ptr.hbm [resolvable:$true] %s53
      %s55 = sshll.u32 [#allocation8], 4
      %s56 = int_to_ptr.vmem [resolvable:$true] %s55
      %58 = dma.hbm_to_vmem [thread:$0]  %s54, 128, %s56, [#allocation9]
    $region17: #{tpu_custom_call.1} parent=1 // pred_fallthru
      _
    // Predicated region
    $region18: #{tpu_custom_call.1} parent=1 // pred_check
      _
    $region19: #{tpu_custom_call.1} parent=1 // pred_check_branch
      %60 = sbr.rel (0) target = $region21
    $region20: #{tpu_custom_call.1} parent=1 // pred_region
      %62 = dma.done [#allocation3], 32
    $region21: #{tpu_custom_call.1} parent=1 // pred_fallthru
      _
    // Predicated region
    $region22: #{tpu_custom_call.1} parent=1 // pred_check
      _
    $region23: #{tpu_custom_call.1} parent=1 // pred_check_branch
      %64 = sbr.rel (0) target = $region25
    $region24: #{tpu_custom_call.1} parent=1 // pred_region
      %66 = dma.done [#allocation6], 32
    $region25: #{tpu_custom_call.1} parent=1 // pred_fallthru
      _
    // Predicated region
    $region26: #{tpu_custom_call.1} parent=1 // pred_check
      _
    $region27: #{tpu_custom_call.1} parent=1 // pred_check_branch
      %68 = sbr.rel (0) target = $region29
    $region28: #{tpu_custom_call.1} parent=1 // pred_region
      %70 = dma.done [#allocation6], 4864
    $region29: #{tpu_custom_call.1} parent=1 // pred_fallthru
      _
    // Predicated region
    $region30: #{tpu_custom_call.1} parent=1 // pred_check
      _
    $region31: #{tpu_custom_call.1} parent=1 // pred_check_branch
      %72 = sbr.rel (0) target = $region33
    $region32: #{tpu_custom_call.1} parent=1 // pred_region
      %74 = dma.done [#allocation9], 128
    $region33: #{tpu_custom_call.1} parent=1 // pred_fallthru
      _
    %v75 = vld [vmem:[#allocation2] sm:$0x3]
    %v76 = vld [vmem:[#allocation5] sm:$0x3]
    %v77 = vld [vmem:[#allocation7] sm:$0xff]
    %v78 = vld [vmem:[#allocation7 + $0x8] sm:$0xff]
    %v79 = vld [vmem:[#allocation7 + $0x10] sm:$0xff]
    %v80 = vld [vmem:[#allocation7 + $0x18] sm:$0xff]
    %v81 = vld [vmem:[#allocation7 + $0x20] sm:$0xff]
    %v82 = vld [vmem:[#allocation7 + $0x28] sm:$0xff]
    %vm83 = vcmask 130048
    %v85 = vsel %vm83, %v76, 0
    %87 = vmatpush.msra.mxu0 0.0
    %88 = vmatpush.msra.mxu0 0.0
    %89 = vmatpush.msra.mxu0 0.0
    %90 = vmatpush.msra.mxu0 0.0
    %91 = vmatpush.msra.mxu0 0.0
    %92 = vmatpush.msra.mxu0 0.0
    %93 = vmatpush.msra.mxu0 0.0
    %94 = vmatpush.msra.mxu0 0.0
    %95 = vmatpush.msra.mxu0 0.0
    %96 = vmatpush.msra.mxu0 0.0
    %97 = vmatpush.msra.mxu0 0.0
    %98 = vmatpush.msra.mxu0 0.0
    %99 = vmatpush.msra.mxu0 0.0
    %100 = vmatpush.msra.mxu0 0.0
    %101 = vmatpush.msra.mxu0 %v82
    %102 = vmatpush.msra.mxu0 %v81
    %103 = vmatmul.f32.gmra.mxu0 %v85
    %v104 = vpop.f32.mrf.mxu0
    %v105 = vadd.f32 0.0, %v104
    %106 = vdwg.mxu0
    %vm107 = vcmask 261120
    %v109 = vsel %vm107, %v75, 0
    %111 = vmatpush.msra.mxu0 0.0
    %112 = vmatpush.msra.mxu0 0.0
    %113 = vmatpush.msra.mxu0 0.0
    %114 = vmatpush.msra.mxu0 0.0
    %115 = vmatpush.msra.mxu0 0.0
    %116 = vmatpush.msra.mxu0 0.0
    %117 = vmatpush.msra.mxu0 0.0
    %118 = vmatpush.msra.mxu0 0.0
    %119 = vmatpush.msra.mxu0 0.0
    %120 = vmatpush.msra.mxu0 0.0
    %121 = vmatpush.msra.mxu0 0.0
    %122 = vmatpush.msra.mxu0 0.0
    %123 = vmatpush.msra.mxu0 %v80
    %124 = vmatpush.msra.mxu0 %v79
    %125 = vmatpush.msra.mxu0 %v78
    %126 = vmatpush.msra.mxu0 %v77
    %127 = vmatmul.f32.gmra.mxu0 %v109
    %v128 = vpop.f32.mrf.mxu0
    %v129 = vadd.f32 %v105, %v128
    %130 = vdwg.mxu0
    %v131 = vld [vmem:[#allocation8] sm:$0x1]
    %v132 = vperm.slane %v131, 0
    %v133 = vadd.f32 %v129, %v132
    %v134 = vmax.f32 %v133, 0.0
    %v135 = vld [vmem:[#allocation7 + $0x30] sm:$0xff]
    %v136 = vld [vmem:[#allocation7 + $0x38] sm:$0xff]
    %v137 = vld [vmem:[#allocation7 + $0x40] sm:$0xff]
    %v138 = vld [vmem:[#allocation7 + $0x48] sm:$0xff]
    %v139 = vld [vmem:[#allocation7 + $0x50] sm:$0xff]
    %v140 = vld [vmem:[#allocation7 + $0x58] sm:$0xff]
    %v141 = vld [vmem:[#allocation7 + $0x60] sm:$0xff]
    %v142 = vld [vmem:[#allocation7 + $0x68] sm:$0xff]
    %v143 = vld [vmem:[#allocation7 + $0x70] sm:$0xff]
    %v144 = vld [vmem:[#allocation7 + $0x78] sm:$0xff]
    %v145 = vld [vmem:[#allocation7 + $0x80] sm:$0xff]
    %v146 = vld [vmem:[#allocation7 + $0x88] sm:$0xff]
    %v147 = vld [vmem:[#allocation7 + $0x90] sm:$0xff]
    %v148 = vld [vmem:[#allocation7 + $0x98] sm:$0xff]
    %v149 = vld [vmem:[#allocation7 + $0xa0] sm:$0xff]
    %v150 = vld [vmem:[#allocation7 + $0xa8] sm:$0xff]
    %v151 = vld [vmem:[#allocation8 + $0x1] sm:$0x1]
    %v152 = vperm.slane %v151, 0
    %153 = vmatpush.msra.mxu0 %v150
    %154 = vmatpush.msra.mxu0 %v149
    %155 = vmatpush.msra.mxu0 %v148
    %156 = vmatpush.msra.mxu0 %v147
    %157 = vmatpush.msra.mxu0 %v146
    %158 = vmatpush.msra.mxu0 %v145
    %159 = vmatpush.msra.mxu0 %v144
    %160 = vmatpush.msra.mxu0 %v143
    %161 = vmatpush.msra.mxu0 %v142
    %162 = vmatpush.msra.mxu0 %v141
    %163 = vmatpush.msra.mxu0 %v140
    %164 = vmatpush.msra.mxu0 %v139
    %165 = vmatpush.msra.mxu0 %v138
    %166 = vmatpush.msra.mxu0 %v137
    %167 = vmatpush.msra.mxu0 %v136
    %168 = vmatpush.msra.mxu0 %v135
    %169 = vmatmul.f32.gmra.mxu0 %v134
    %v170 = vpop.f32.mrf.mxu0
    %v171 = vadd.f32 %v152, %v170
    %172 = vdwg.mxu0
    %v173 = vmax.f32 %v171, 0.0
    %v174 = vld [vmem:[#allocation7 + $0xb0] sm:$0xff]
    %v175 = vld [vmem:[#allocation7 + $0xb8] sm:$0xff]
    %v176 = vld [vmem:[#allocation7 + $0xc0] sm:$0xff]
    %v177 = vld [vmem:[#allocation7 + $0xc8] sm:$0xff]
    %v178 = vld [vmem:[#allocation7 + $0xd0] sm:$0xff]
    %v179 = vld [vmem:[#allocation7 + $0xd8] sm:$0xff]
    %v180 = vld [vmem:[#allocation7 + $0xe0] sm:$0xff]
    %v181 = vld [vmem:[#allocation7 + $0xe8] sm:$0xff]
    %v182 = vld [vmem:[#allocation7 + $0xf0] sm:$0xff]
    %v183 = vld [vmem:[#allocation7 + $0xf8] sm:$0xff]
    %v184 = vld [vmem:[#allocation7 + $0x100] sm:$0xff]
    %v185 = vld [vmem:[#allocation7 + $0x108] sm:$0xff]
    %v186 = vld [vmem:[#allocation7 + $0x110] sm:$0xff]
    %v187 = vld [vmem:[#allocation7 + $0x118] sm:$0xff]
    %v188 = vld [vmem:[#allocation7 + $0x120] sm:$0xff]
    %v189 = vld [vmem:[#allocation7 + $0x128] sm:$0xff]
    %v190 = vld [vmem:[#allocation8 + $0x2] sm:$0x1]
    %v191 = vperm.slane %v190, 0
    %192 = vmatpush.msra.mxu0 %v189
    %193 = vmatpush.msra.mxu0 %v188
    %194 = vmatpush.msra.mxu0 %v187
    %195 = vmatpush.msra.mxu0 %v186
    %196 = vmatpush.msra.mxu0 %v185
    %197 = vmatpush.msra.mxu0 %v184
    %198 = vmatpush.msra.mxu0 %v183
    %199 = vmatpush.msra.mxu0 %v182
    %200 = vmatpush.msra.mxu0 %v181
    %201 = vmatpush.msra.mxu0 %v180
    %202 = vmatpush.msra.mxu0 %v179
    %203 = vmatpush.msra.mxu0 %v178
    %204 = vmatpush.msra.mxu0 %v177
    %205 = vmatpush.msra.mxu0 %v176
    %206 = vmatpush.msra.mxu0 %v175
    %207 = vmatpush.msra.mxu0 %v174
    %208 = vmatmul.f32.gmra.mxu0 %v173
    %v209 = vpop.f32.mrf.mxu0
    %v210 = vadd.f32 %v191, %v209
    %211 = vdwg.mxu0
    %212 = vst [vmem:[#allocation10] sm:$0x3] %v210
    // Predicated region
    $region34: #{tpu_custom_call.1} parent=1 // pred_check
      _
    $region35: #{tpu_custom_call.1} parent=1 // pred_check_branch
      %214 = sbr.rel (0) target = $region37
    $region36: #{tpu_custom_call.1} parent=1 // pred_region
      %216 = vsyncadd [#allocation4], 0
      %s218 = sshll.u32 [#allocation10], 4
      %s219 = int_to_ptr.vmem [resolvable:$true] %s218
      %s220 = sshll.u32 %s4, 4
      %s221 = int_to_ptr.hbm [resolvable:$true] %s220
      %223 = dma.vmem_to_hbm [thread:$0]  %s219, 32, %s221, [#allocation4]
    $region37: #{tpu_custom_call.1} parent=1 // pred_fallthru
      _
    // Predicated region
    $region38: #{tpu_custom_call.1} parent=1 // pred_check
      _
    $region39: #{tpu_custom_call.1} parent=1 // pred_check_branch
      %225 = sbr.rel (0) target = $region41
    $region40: #{tpu_custom_call.1} parent=1 // pred_region
      %227 = dma.done [#allocation4], 32
    $region41: #{tpu_custom_call.1} parent=1 // pred_fallthru
      _
    %228 = vsyncpa [#allocation3], 1
    %229 = vsyncpa [#allocation6], 1
    %230 = vsyncpa [#allocation9], 1
    %231 = vsyncpa [#allocation4], 1

</llo_original>
